<compile_context>
chip_gen: v6e
topology: v6e:2x2x1
jax: 0.10.0
libtpu: 0.0.40
codegen_flags: <defaults>
</compile_context>

<pallas_src>
import math

import jax
import jax.numpy as jnp
from jax import lax
from jax.experimental import pallas as pl
from jax.experimental.pallas import tpu as pltpu

_LANES = 128
_TARGET_TILE_BYTES = 2 << 20   # ~2 MiB per block (safe on v5e/v6e/v7x)
_MIN_GRID_STEPS = 4            # keep both v7x TensorCores busy


def _drop_path_kernel(scale_ref, src_ref, x_ref, o_ref):
    # scale_ref: (B,) f32 per-sample scales (SMEM, scalar-prefetched).
    # src_ref:   (B,) i32 remap; only used by the input index_map.
    # x_ref/o_ref: one (1, R, 128) lane-dense tile of a flattened sample.
    del src_ref
    b = pl.program_id(1)                       # grid = (nblk, B): batch innermost
    s = scale_ref[b].astype(o_ref.dtype)       # matches timm: multiply in x dtype
    o_ref[...] = x_ref[...] * s


def _drop_path_lane_dense(x3, scale, src_b):
    """Scale each sample of a lane-dense (B, rows, 128) array by scale[b]."""
    B, rows, _ = x3.shape
    itemsize = jnp.dtype(x3.dtype).itemsize

    # ~2 MiB blocks, sublane-aligned (multiple of 8 rows).
    r_max = max(8, ((_TARGET_TILE_BYTES // (_LANES * itemsize)) // 8) * 8)
    R = rows if rows <= r_max else r_max
    nblk = (rows + R - 1) // R
    # Ensure enough grid steps so megacore (v7x, 2 TCs) can split the work.
    while B * nblk < _MIN_GRID_STEPS and R > 8:
        R = max(8, ((R // 2) // 8) * 8)
        nblk = (rows + R - 1) // R

    bytes_accessed = 2 * B * rows * _LANES * itemsize + 8 * B
    return pl.pallas_call(
        _drop_path_kernel,
        out_shape=jax.ShapeDtypeStruct((B, rows, _LANES), x3.dtype),
        grid_spec=pltpu.PrefetchScalarGridSpec(
            num_scalar_prefetch=2,
            grid=(nblk, B),  # batch innermost -> dropped samples revisit the
                             # previous step's input block (DMA elided).
            in_specs=[pl.BlockSpec((1, R, _LANES),
                                   lambda r, b, scale, srcb: (srcb[b], r, 0))],
            out_specs=pl.BlockSpec((1, R, _LANES),
                                   lambda r, b, scale, srcb: (b, r, 0)),
        ),
        compiler_params=pltpu.CompilerParams(
            dimension_semantics=("parallel", "parallel")),
        cost_estimate=pl.CostEstimate(flops=B * rows * _LANES,
                                      transcendentals=0,
                                      bytes_accessed=bytes_accessed),
    )(scale, src_b, x3)


def drop_path(x, key, drop_prob=0.0, training=True, scale_by_keep=True):
    """Pallas implementation of timm-style drop_path on (B, ...) inputs."""
    # NOTE: drop_prob / training are assumed to be static Python values.
    if drop_prob == 0.0 or not training:
        return x
    keep_prob = 1.0 - drop_prob

    orig_shape = x.shape
    B = x.shape[0]
    LC = math.prod(x.shape[1:])

    # Per-sample scale, computed once over B scalars in the wrapper.
    u = jax.random.uniform(key, (B,), dtype=jnp.float32)
    kept = u < keep_prob
    scale_val = (1.0 / keep_prob) if (scale_by_keep and keep_prob > 0.0) else 1.0
    scale = jnp.where(kept, jnp.float32(scale_val), jnp.float32(0.0))

    # Remap for dropped samples: point at the last kept sample <= b so the
    # input block index repeats across consecutive (dropped) grid steps and the
    # fetch is elided. If no kept sample precedes b, fall back to b itself
    # (fetches its own block; output is still 0 via scale[b] == 0).
    idx = jnp.arange(B, dtype=jnp.int32)
    last_kept = lax.cummax(jnp.where(kept, idx, jnp.int32(-1)), axis=0)
    src_b = jnp.where(last_kept < 0, idx, last_kept).astype(jnp.int32)

    def _xla_scale(arr):
        return arr * scale.reshape((B,) + (1,) * (arr.ndim - 1)).astype(arr.dtype)

    main = (LC // _LANES) * _LANES
    if main == 0:
        # Whole sample smaller than one lane row: a single fused XLA multiply
        # beats padding to 128 lanes. (Never hit by Swin shapes.)
        return _xla_scale(x)

    x_flat = x.reshape(B, LC)  # free reshape (contiguous)

    if main == LC:
        # 128-aligned trailing size (typical Swin: L*C % 128 == 0): pure Pallas.
        rows = LC // _LANES
        out = _drop_path_lane_dense(x_flat.reshape(B, rows, _LANES), scale, src_b)
        return out.reshape(orig_shape)

    # Non-aligned: Pallas on the aligned prefix, tiny XLA multiply on the
    # <=127-element tail. Avoids the pad + output-slice extra HBM passes.
    rows = main // _LANES
    head = _drop_path_lane_dense(
        x_flat[:, :main].reshape(B, rows, _LANES), scale, src_b)
    tail = _xla_scale(x_flat[:, main:])
    out = jnp.concatenate([head.reshape(B, main), tail], axis=1)
    return out.reshape(orig_shape)


class DropPath:
    """Mirror of the PyTorch DropPath module (no parameters)."""

    def __init__(self, drop_prob: float = 0.0, scale_by_keep: bool = True):
        self.drop_prob = drop_prob
        self.scale_by_keep = scale_by_keep
        self.training = True

    def __call__(self, x, key):
        return drop_path(x, key, self.drop_prob, self.training, self.scale_by_keep)


def _reference(x, key, drop_prob, scale_by_keep):
    keep_prob = 1.0 - drop_prob
    B = x.shape[0]
    u = jax.random.uniform(key, (B,), dtype=jnp.float32)
    sv = (1.0 / keep_prob) if (scale_by_keep and keep_prob > 0.0) else 1.0
    mask = jnp.where(u < keep_prob, jnp.float32(sv), jnp.float32(0.0))
    return x * mask.reshape((B,) + (1,) * (x.ndim - 1)).astype(x.dtype)


if __name__ == "__main__":
    key = jax.random.PRNGKey(0)
    kx, kd, kx2, kd2, kx3, kd3, kx4, kd4 = jax.random.split(key, 8)

    mod = DropPath(drop_prob=0.25, scale_by_keep=True)

    # Swin-like shape: (B, L=H*W tokens, C channels); L*C = 6144 is 128-aligned
    # -> pure Pallas path, grid (nblk=2, B=2) after the megacore-split heuristic.
    B, L, C = 2, 64, 96
    x = jax.random.normal(kx, (B, L, C), dtype=jnp.float32)
    y = jax.block_until_ready(mod(x, kd))
    y_ref = _reference(x, kd, mod.drop_prob, mod.scale_by_keep)
    assert y.shape == x.shape
    assert jnp.allclose(y, y_ref, atol=1e-6), "mismatch vs reference (aligned shape)"

    # Non-128-aligned trailing size (L*C = 200): Pallas prefix + XLA tail path.
    x2 = jax.random.normal(kx2, (2, 10, 20), dtype=jnp.float32)
    y2 = jax.block_until_ready(mod(x2, kd2))
    y2_ref = _reference(x2, kd2, mod.drop_prob, mod.scale_by_keep)
    assert y2.shape == x2.shape
    assert jnp.allclose(y2, y2_ref, atol=1e-6), "mismatch vs reference (split path)"

    # Tiny sample (< 128 elements per sample): plain XLA fallback.
    x3 = jax.random.normal(kx3, (2, 8, 4), dtype=jnp.float32)
    y3 = jax.block_until_ready(mod(x3, kd3))
    y3_ref = _reference(x3, kd3, mod.drop_prob, mod.scale_by_keep)
    assert y3.shape == x3.shape
    assert jnp.allclose(y3, y3_ref, atol=1e-6), "mismatch vs reference (tiny shape)"

    # bf16, larger batch (exercises dropped-sample remap and bf16 multiply).
    x4 = jax.random.normal(kx4, (4, 32, 96), dtype=jnp.bfloat16)
    y4 = jax.block_until_ready(mod(x4, kd4))
    y4_ref = _reference(x4, kd4, mod.drop_prob, mod.scale_by_keep)
    assert y4.shape == x4.shape
    assert jnp.allclose(y4.astype(jnp.float32), y4_ref.astype(jnp.float32),
                        atol=1e-2), "mismatch vs reference (bf16)"

    # Eval mode (or drop_prob == 0) is an identity pass-through.
    mod.training = False
    y_eval = jax.block_until_ready(mod(x, kd))
    assert jnp.allclose(y_eval, x)

    print("KERNEL_OK")
</pallas_src>

<mosaic_0001>
module attributes {stable_mosaic.version = 11 : i64} {
  func.func @_drop_path_kernel(%arg0: i32, %arg1: i32, %arg2: memref<2xf32, #tpu.memory_space<smem>>, %arg3: memref<2xi32, #tpu.memory_space<smem>>, %arg4: memref<1x24x128xf32, #tpu.memory_space<vmem>>, %arg5: memref<1x24x128xf32, #tpu.memory_space<vmem>>) attributes {dimension_semantics = [#tpu.dimension_semantics<parallel>, #tpu.dimension_semantics<parallel>], iteration_bounds = array<i64: 2, 2>, scalar_prefetch = 2 : i64, scratch_operands = 0 : i64, tpu.core_type = #tpu.core_type<tc>, window_params = [{transform_indices = @transform_0, window_bounds = array<i64: 1, 24, 128>}, {transform_indices = @transform_1, window_bounds = array<i64: 1, 24, 128>}]} {
    %0 = arith.index_cast %arg1 : i32 to index
    %1 = memref.load %arg2[%0] : memref<2xf32, #tpu.memory_space<smem>>
    %c0 = arith.constant 0 : index
    %c0_0 = arith.constant 0 : index
    %c0_1 = arith.constant 0 : index
    %2 = vector.load %arg4[%c0, %c0_0, %c0_1] : memref<1x24x128xf32, #tpu.memory_space<vmem>>, vector<1x24x128xf32>
    %3 = vector.broadcast %1 : f32 to vector<1x24x128xf32>
    %4 = arith.mulf %2, %3 : vector<1x24x128xf32>
    %c0_2 = arith.constant 0 : index
    %c0_3 = arith.constant 0 : index
    %c0_4 = arith.constant 0 : index
    %5 = vector.load %arg5[%c0_2, %c0_3, %c0_4] : memref<1x24x128xf32, #tpu.memory_space<vmem>>, vector<1x24x128xf32>
    tpu.vector_store %arg5[%c0_2, %c0_3, %c0_4], %4 {strides = array<i32>} : memref<1x24x128xf32, #tpu.memory_space<vmem>>, vector<1x24x128xf32>,
    return
  }
  func.func @transform_0(%arg0: i32, %arg1: i32, %arg2: memref<2xf32, #tpu.memory_space<smem>>, %arg3: memref<2xi32, #tpu.memory_space<smem>>) -> (i32, i32, i32) {
    %0 = arith.index_cast %arg1 : i32 to index
    %1 = memref.load %arg3[%0] : memref<2xi32, #tpu.memory_space<smem>>
    %c0_i32 = arith.constant 0 : i32
    %c0_i32_0 = arith.constant 0 : i32
    return %1, %arg0, %c0_i32 : i32, i32, i32
  }
  func.func @transform_1(%arg0: i32, %arg1: i32, %arg2: memref<2xf32, #tpu.memory_space<smem>>, %arg3: memref<2xi32, #tpu.memory_space<smem>>) -> (i32, i32, i32) {
    %c0_i32 = arith.constant 0 : i32
    %c0_i32_0 = arith.constant 0 : i32
    return %arg1, %arg0, %c0_i32 : i32, i32, i32
  }
}

</mosaic_0001>

<llo_original>
// kernel: tpu_custom_call.1
$region0: #{tpu_custom_call.1}
  #allocation0 [shape = 'u32[]', space=smem, size = 0x4, offset = 0x4, fixed_abs, tag = 'smem constant byte address 0x4 - core index']
  #allocation1 [shape = 'u32[144,128]{1,0:T(1,128)}', space=vmem, size = 0x12000, scoped, tag = 'internal scratch']
  #allocation2 [shape = 's32[1]{0}', space=sflag, size = 0x4, scoped, tag = 'scoped memory for tpu_custom_call.1']
  #allocation3 [shape = 'u8[512]{0}', space=smem, size = 0x200, scoped, tag = 'prefetched SMEM operand 0']
  #allocation4 [shape = 'u8[512]{0}', space=smem, size = 0x200, scoped, tag = 'prefetched SMEM operand 1']
  %s0 = inlined_call_operand.hbm [shape: f32[2], index: 0, kind: input, shape index: {}]
  %s1 = inlined_call_operand.vmem [shape: s32[2], index: 1, kind: input, shape index: {}]
  %s2 = inlined_call_operand.hbm [shape: f32[2,48,128], index: 2, kind: input, shape index: {}]
  %s3 = inlined_call_operand.hbm [shape: f32[2,48,128], index: 3, kind: output, shape index: {}]
  %s4 = sld [smem:[#allocation0]]
  $region41: #{tpu_custom_call.1} parent=0
    _
  %s6 = ssub.s32 1, %s4
  %s7 = scalar_select 0, %s6, %s4
  %9 = dma.hbm_to_smem %s0, 16, [#allocation3], [#allocation2]
  %s10 = sshll.u32 %s1, 4
  %s11 = int_to_ptr.vmem [resolvable:$true] %s10
  %13 = dma.vmem_to_smem %s11, 16, [#allocation4], [#allocation2]
  %14 = dma.done [#allocation2], 32
  %15 = sfence
  $region1: #{tpu_custom_call.1} parent=0
    #allocation5 [shape = 'u8[24576]{0}', space=vmem, size = 0x6000, scoped, tag = 'input window, operand 2']
    #allocation6 [shape = 's32[2]{0}', space=sflag, size = 0x8, scoped, tag = 'scoped memory for tpu_custom_call.1']
    #allocation7 [shape = 's32[2]{0}', space=sflag, size = 0x8, scoped, tag = 'scoped memory for tpu_custom_call.1']
    #allocation8 [shape = 'u8[24576]{0}', space=vmem, size = 0x6000, scoped, tag = 'output window, operand 0']
    %16 = vsyncpa [#allocation6], 0
    %s17 = scalar_lea.sflag [#allocation6], 1
    %18 = vsyncpa %s17, 0
    %19 = vsyncpa [#allocation7], 0
    %s20 = scalar_lea.sflag [#allocation7], 1
    %21 = vsyncpa %s20, 0
    loop: start=0, step=1, limit=6
    $region2: #{tpu_custom_call.1} parent=1 // loop_pre_header
      _
    $region3: #{tpu_custom_call.1} parent=1 // loop_header
      %s23 = sphi 0, %s27
      %p24 = scmp.ge.s32.totalorder %s23, 6
      %s30 = sphi 0, %s42
      %s31 = sphi 0, %s38
      %s32 = sphi 0, %s30
      %s33 = sphi 0, %s31
      %s34 = sphi 0, %s32
      %s35 = sphi 0, %s33
      %s49 = sphi 0, %s51
      %s52 = sphi 0, %s49
      %s53 = sphi 0, %s52
      %s69 = sphi 0, %s53
      %s77 = sphi 0, %s79
      %s80 = sphi 0, %s77
      %s81 = sphi 0, %s80
      %s97 = sphi 0, %s81
    $region4: #{tpu_custom_call.1} parent=1 // loop_header_branch
      %26 = sbr.rel (%p24) target = $region8
    $region5: #{tpu_custom_call.1} parent=1 // loop_body
      %s28 = ssub.s32 %s23, 1
      %s29 = ssub.s32 %s23, 2
      %s36 = sadd.s32 1, %s31
      %p37 = scmp.ge.s32.totalorder %s36, 2
      %s38 = scalar_select %p37, 0, %s36
      %s39 = sadd.s32 1, %s30
      %s40 = scalar_select %p37, %s39, %s30
      %p41 = scmp.ge.s32.totalorder %s40, 2
      %s42 = scalar_select %p41, 0, %s40
      %s43 = sld [smem:[#allocation4 + %s31]]
      %s44 = sld [smem:[#allocation4 + %s38]]
      %s45 = ssub.s32 %s43, %s44
      %s46 = ssub.s32 %s30, %s42
      %s47 = sor.u32 %s45, %s46
      %p48 = scmp.eq.s32.totalorder %s47, 0
      %s50 = sadd.s32 %s49, 1
      %s51 = scalar_select %p48, %s49, %s50
      %p54 = pneg %p48
      %p55 = scmp.eq.s32.totalorder %s23, 3
      %p56 = por %p54, %p55
      %p57 = scmp.ne.s32.totalorder %s49, %s52
      %p58 = scmp.eq.s32.totalorder %s23, 0
      %p59 = por %p57, %p58
      %p60 = scmp.ne.s32.totalorder %s49, %s52
      %p61 = scmp.eq.s32.totalorder %s28, 3
      %p62 = por %p60, %p61
      %p63 = scmp.ne.s32.totalorder %s52, %s53
      %p64 = scmp.eq.s32.totalorder %s28, 0
      %p65 = por %p63, %p64
      %p66 = scmp.ne.s32.totalorder %s52, %s53
      %p67 = scmp.eq.s32.totalorder %s29, 3
      %p68 = por %p66, %p67
      %p70 = scmp.ne.s32.totalorder %s53, %s69
      %p71 = scmp.eq.s32.totalorder %s29, 0
      %p72 = por %p70, %p71
      %s73 = ssub.s32 %s31, %s38
      %s74 = ssub.s32 %s30, %s42
      %s75 = sor.u32 %s73, %s74
      %p76 = scmp.eq.s32.totalorder %s75, 0
      %s78 = sadd.s32 %s77, 1
      %s79 = scalar_select %p76, %s77, %s78
      %p82 = pneg %p76
      %p83 = scmp.eq.s32.totalorder %s23, 3
      %p84 = por %p82, %p83
      %p85 = scmp.ne.s32.totalorder %s77, %s80
      %p86 = scmp.eq.s32.totalorder %s23, 0
      %p87 = por %p85, %p86
      %p88 = scmp.ne.s32.totalorder %s77, %s80
      %p89 = scmp.eq.s32.totalorder %s28, 3
      %p90 = por %p88, %p89
      %p91 = scmp.ne.s32.totalorder %s80, %s81
      %p92 = scmp.eq.s32.totalorder %s28, 0
      %p93 = por %p91, %p92
      %p94 = scmp.ne.s32.totalorder %s80, %s81
      %p95 = scmp.eq.s32.totalorder %s29, 3
      %p96 = por %p94, %p95
      %p98 = scmp.ne.s32.totalorder %s81, %s97
      %p99 = scmp.eq.s32.totalorder %s29, 0
      %p100 = por %p98, %p99
      %p101 = scmp.le.s32.totalorder 1, %s23
      %p102 = scmp.lt.s32.totalorder %s23, 5
      %p103 = pnand %p101, %p102
      %p104 = pneg %p103
      // Predicated region
      $region9: #{tpu_custom_call.1} parent=5 // pred_check
        _
      $region10: #{tpu_custom_call.1} parent=5 // pred_check_branch
        %106 = sbr.rel (%p103) target = $region12
      $region11: #{tpu_custom_call.1} parent=5 // pred_region
        %s107 = ssub.s32 %s23, 1
      $region12: #{tpu_custom_call.1} parent=5 // pred_fallthru
        _
      %p108 = scmp.lt.s32.totalorder %s23, 4
      // Predicated region
      $region13: #{tpu_custom_call.1} parent=5 // pred_check
        %p109 = pneg %p108
      $region14: #{tpu_custom_call.1} parent=5 // pred_check_branch
        %111 = sbr.rel (%p109) target = $region16
      $region15: #{tpu_custom_call.1} parent=5 // pred_region
        // Predicated region
        $region17: #{tpu_custom_call.1} parent=15 // pred_check
          %p112 = pneg %p59
        $region18: #{tpu_custom_call.1} parent=15 // pred_check_branch
          %114 = sbr.rel (%p112) target = $region20
        $region19: #{tpu_custom_call.1} parent=15 // pred_region
          %s115 = sand.u32 %s49, 1
          %s116 = scalar_lea.sflag [#allocation6], %s115
          %s117 = sand.u32 %s49, 1
          %s118 = smul.addr %s117, 24
          %s119 = scalar_lea.vmem [#allocation5], %s118
          %s120 = sld [smem:[#allocation4 + %s31]]
          %s121 = smul.u32 3, %s30
          %s123 = ssub.s32 384, 384
          %124 = vsyncadd %s116, %s123
          %s125 = smul.addr %s120, 6
          %s126 = sadd.s32 %s121, %s125
          %s127 = smul.addr %s126, 128
          %s128 = scalar_lea.hbm %s2, %s127
          %s129 = sshll.u32 %s119, 4
          %s130 = int_to_ptr.vmem [resolvable:$true] %s129
          %135 = dma.hbm_to_vmem [thread:$0]  %s128, 384, %s130, %s116, 128, 128, 8
        $region20: #{tpu_custom_call.1} parent=15 // pred_fallthru
          _
      $region16: #{tpu_custom_call.1} parent=5 // pred_fallthru
        _
      %p136 = scmp.le.s32.totalorder 1, %s23
      %p137 = scmp.lt.s32.totalorder %s23, 5
      %p138 = pnand %p136, %p137
      %p139 = pneg %p138
      // Predicated region
      $region21: #{tpu_custom_call.1} parent=5 // pred_check
        _
      $region22: #{tpu_custom_call.1} parent=5 // pred_check_branch
        %141 = sbr.rel (%p138) target = $region24
      $region23: #{tpu_custom_call.1} parent=5 // pred_region
        %s142 = ssub.s32 %s23, 1
        %s143 = sand.u32 %s52, 1
        %s144 = scalar_lea.sflag [#allocation6], %s143
        %s145 = sand.u32 %s52, 1
        %s146 = smul.addr %s145, 24
        %s147 = scalar_lea.vmem [#allocation5], %s146
        // Predicated region
        $region25: #{tpu_custom_call.1} parent=23 // pred_check
          %p148 = pneg %p65
        $region26: #{tpu_custom_call.1} parent=23 // pred_check_branch
          %150 = sbr.rel (%p148) target = $region28
        $region27: #{tpu_custom_call.1} parent=23 // pred_region
          %151 = dma.done %s144, 384
        $region28: #{tpu_custom_call.1} parent=23 // pred_fallthru
          _
        %s152 = sand.u32 %s52, 1
        %s153 = scalar_lea.sflag [#allocation6], %s152
        %s154 = sand.u32 %s52, 1
        %s155 = smul.addr %s154, 24
        %s156 = scalar_lea.vmem [#allocation5], %s155
        %p157 = pneg %p65
        %p158 = pneg %p62
        %p159 = pneg %p93
        %p160 = pneg %p90
        %s161 = sand.u32 %s80, 1
        %s162 = scalar_lea.sflag [#allocation7], %s161
        %s163 = sand.u32 %s80, 1
        %s164 = smul.addr %s163, 24
        %s165 = scalar_lea.vmem [#allocation8], %s164
        %s166 = sld [smem:[#allocation4 + %s33]]
        %s167 = smul.u32 3, %s32
        %s168 = smul.u32 3, %s32
        %s169 = sld [smem:[#allocation3 + %s33]]
        %v170 = vld [vmem:[%s147] sm:$0xff]
        %v171 = vld [vmem:[%s147 + $0x8] sm:$0xff]
        %v172 = vld [vmem:[%s147 + $0x10] sm:$0xff]
        %v173 = vstv %s169
        %v174 = vmul.f32 %v170, %v173
        %v175 = vmul.f32 %v171, %v173
        %v176 = vmul.f32 %v172, %v173
        %177 = vst [vmem:[%s165] sm:$0xff] %v174
        %178 = vst [vmem:[%s165 + $0x8] sm:$0xff] %v175
        %179 = vst [vmem:[%s165 + $0x10] sm:$0xff] %v176
        %s180 = sand.u32 %s80, 1
        %s181 = scalar_lea.sflag [#allocation7], %s180
        %s182 = sand.u32 %s80, 1
        %s183 = smul.addr %s182, 24
        %s184 = scalar_lea.vmem [#allocation8], %s183
        // Predicated region
        $region29: #{tpu_custom_call.1} parent=23 // pred_check
          %p185 = pneg %p90
        $region30: #{tpu_custom_call.1} parent=23 // pred_check_branch
          %187 = sbr.rel (%p185) target = $region32
        $region31: #{tpu_custom_call.1} parent=23 // pred_region
          %s188 = smul.u32 3, %s32
          %s190 = ssub.s32 384, 384
          %191 = vsyncadd %s181, %s190
          %s192 = smul.addr %s33, 6
          %s193 = sadd.s32 %s188, %s192
          %s194 = smul.addr %s193, 128
          %s195 = scalar_lea.hbm %s3, %s194
          %s196 = sshll.u32 %s184, 4
          %s197 = int_to_ptr.vmem [resolvable:$true] %s196
          %202 = dma.vmem_to_hbm [thread:$0]  %s197, 384, %s195, %s181, 128, 128, 8
        $region32: #{tpu_custom_call.1} parent=23 // pred_fallthru
          _
      $region24: #{tpu_custom_call.1} parent=5 // pred_fallthru
        _
      %p203 = scmp.le.s32.totalorder 2, %s23
      // Predicated region
      $region33: #{tpu_custom_call.1} parent=5 // pred_check
        %p204 = pneg %p203
      $region34: #{tpu_custom_call.1} parent=5 // pred_check_branch
        %206 = sbr.rel (%p204) target = $region36
      $region35: #{tpu_custom_call.1} parent=5 // pred_region
        %s207 = ssub.s32 %s23, 2
        // Predicated region
        $region37: #{tpu_custom_call.1} parent=35 // pred_check
          %p208 = pneg %p96
        $region38: #{tpu_custom_call.1} parent=35 // pred_check_branch
          %210 = sbr.rel (%p208) target = $region40
        $region39: #{tpu_custom_call.1} parent=35 // pred_region
          %s211 = sand.u32 %s81, 1
          %s212 = scalar_lea.sflag [#allocation7], %s211
          %s213 = sand.u32 %s81, 1
          %s214 = smul.addr %s213, 24
          %s215 = scalar_lea.vmem [#allocation8], %s214
          %216 = dma.done %s212, 384
        $region40: #{tpu_custom_call.1} parent=35 // pred_fallthru
          _
      $region36: #{tpu_custom_call.1} parent=5 // pred_fallthru
        _
    $region6: #{tpu_custom_call.1} parent=1 // loop_footer
      %s27 = sadd.s32 1, %s23
    $region7: #{tpu_custom_call.1} parent=1 // loop_footer_branch
      %22 = sbr.rel target = $region3
    $region8: #{tpu_custom_call.1} parent=1 // loop_exit
      _
    %217 = vsyncpa [#allocation6], 1
    %s218 = scalar_lea.sflag [#allocation6], 1
    %219 = vsyncpa %s218, 1
    %220 = vsyncpa [#allocation7], 1
    %s221 = scalar_lea.sflag [#allocation7], 1
    %222 = vsyncpa %s221, 1

</llo_original>
